<compile_context>
chip_gen: v6e
topology: v6e:2x2x1
jax: 0.10.0
libtpu: 0.0.40
codegen_flags: <defaults>
</compile_context>

<pallas_src>
import numpy as np
import jax
import jax.numpy as jnp
from jax import lax
from jax.experimental import pallas as pl
from jax.experimental.pallas import tpu as pltpu

# ----------------------------- configuration --------------------------------
EX_SHAPE = (6, 4, 16)            # small stand-in for the module's (300, 25, 16) examples
F_IN = int(np.prod(EX_SHAPE))    # flattened features (module: 300*25*16 = 120000)
HIDDEN = 128                     # nn.Linear(F_IN, 128)
EMBED = 128                      # nn.Linear(128, 128)
TEMPERATURE = 0.07
BASE_TEMPERATURE = 1.0
EPS = 1e-12                      # F.normalize eps
MATMUL_DTYPE = jnp.bfloat16      # MXU input dtype (accumulation stays f32)
LOSS_INPUT_DTYPE = jnp.bfloat16  # stage-2 embedding slabs (in-kernel math in f32)


def _round_up(x, m):
    return ((x + m - 1) // m) * m


def _vmem_limit_bytes():
    """Generation-aware scoped-VMEM budget: ~48 MiB on v7x (64 MiB physical),
    ~96 MiB on v5e/v6e (128 MiB physical)."""
    try:
        phys = int(pltpu.get_tpu_info().vmem_capacity_bytes)
    except Exception:                       # conservative fallback if the query fails
        phys = 128 * 1024 * 1024
    return int(min(phys * 3 // 4, 96 * 1024 * 1024))


# --------------------- stage 1: batched, K-tiled embed MLP --------------------
def _embed_kernel(x_ref, w1_ref, b1_ref, w2_ref, b2_ref, out_ref, acc_ref):
    """Grid is (K, M) with K OUTER: the W1 block index only changes with k, so W1 is
    DMA'd exactly once per K block for the whole kernel.  The hidden accumulator and
    the output live whole in VMEM, indexed by the M grid position."""
    k = pl.program_id(0)
    tm = x_ref.shape[0]
    h = acc_ref.shape[1]
    row = pl.multiple_of(pl.program_id(1) * tm, 16)

    @pl.when(k == 0)
    def _init():
        acc_ref[pl.ds(row, tm), :] = jnp.zeros((tm, h), jnp.float32)

    acc_ref[pl.ds(row, tm), :] += jnp.dot(x_ref[...], w1_ref[...],
                                          preferred_element_type=jnp.float32)

    @pl.when(k == pl.num_programs(0) - 1)
    def _finalize():
        hid = jnp.maximum(acc_ref[pl.ds(row, tm), :] + b1_ref[...], 0.0)   # Linear->ReLU
        out_ref[pl.ds(row, tm), :] = (
            jnp.dot(hid.astype(w2_ref.dtype), w2_ref[...],
                    preferred_element_type=jnp.float32) + b2_ref[...])


def _embed_pallas(x, w1, b1, w2, b2, *, tm, tk, vmem_limit):
    u_pad, f_pad = x.shape
    h = w1.shape[1]
    e = w2.shape[1]
    num_k = f_pad // tk
    num_m = u_pad // tm
    return pl.pallas_call(
        _embed_kernel,
        out_shape=jax.ShapeDtypeStruct((u_pad, e), jnp.float32),
        grid=(num_k, num_m),                                  # K outer -> W1 streamed once
        in_specs=[
            pl.BlockSpec((tm, tk), lambda k, m: (m, k)),      # examples (bf16), each block once
            pl.BlockSpec((tk, h), lambda k, m: (k, 0)),       # W1 (bf16), constant over inner m
            pl.BlockSpec((1, h), lambda k, m: (0, 0)),        # b1 (f32, resident)
            pl.BlockSpec((h, e), lambda k, m: (0, 0)),        # W2 (bf16, resident)
            pl.BlockSpec((1, e), lambda k, m: (0, 0)),        # b2 (f32, resident)
        ],
        out_specs=pl.BlockSpec((u_pad, e), lambda k, m: (0, 0)),   # resident whole output
        scratch_shapes=[pltpu.VMEM((u_pad, h), jnp.float32)],      # hidden accumulator
        compiler_params=pltpu.CompilerParams(
            dimension_semantics=("arbitrary", "arbitrary"),
            vmem_limit_bytes=vmem_limit),
    )(x, w1, b1, w2, b2)


def _pick_embed_tiles(n_uniq, feat, vmem_limit):
    """Largest (tm, tk) that fit the per-generation VMEM budget (x + W1 double-buffered,
    resident output x2 + f32 hidden accumulator)."""
    budget = int(vmem_limit * 0.6)
    if n_uniq <= 128:
        tm_opts = [_round_up(n_uniq, 16)]
    else:
        tm_opts = [t for t in (1024, 512, 256, 128) if t <= _round_up(n_uniq, 16)]
    if feat <= 4096:
        tk_opts = [_round_up(feat, 128)]
    else:
        tk_opts = [4096, 2048, 1024, 512]

    def est(tm, tk):
        u_pad = _round_up(n_uniq, tm)
        return (2 * tm * tk * 2            # x blocks, double-buffered bf16
                + 2 * tk * HIDDEN * 2      # W1 blocks, double-buffered bf16
                + 3 * u_pad * HIDDEN * 4   # resident output (x2 bufs) + hidden acc
                + 2 * HIDDEN * EMBED * 2 + 8 * EMBED * 4)

    for tm in tm_opts:
        for tk in tk_opts:
            if est(tm, tk) <= budget:
                return tm, tk
    return tm_opts[-1], tk_opts[-1]


# ------------------- stage 2: vectorized contrastive-loss kernel --------------
def _loss_kernel(pcnt_ref, ncnt_ref, a_ref, p_ref, n_ref, out_ref):
    """All block_a anchors of this grid step processed as one batched computation."""
    a = a_ref[...].astype(jnp.float32)           # (BA, E)
    p = p_ref[...].astype(jnp.float32)           # (BA, P, E)
    n = n_ref[...].astype(jnp.float32)           # (BA, N, E)
    pc = pcnt_ref[...]                           # (BA, 1) int32 ragged positive counts
    nc = ncnt_ref[...]                           # (BA, 1) int32 ragged negative counts

    ba, p_max, _ = p.shape
    n_max = n.shape[1]
    inv_t = 1.0 / TEMPERATURE
    inv_eps = 1.0 / EPS

    pmask_b = lax.broadcasted_iota(jnp.int32, (ba, p_max, 1), 1) < pc[:, :, None]
    nmask_b = lax.broadcasted_iota(jnp.int32, (ba, n_max, 1), 1) < nc[:, :, None]
    pmask = pmask_b.astype(jnp.float32)
    nmask = nmask_b.astype(jnp.float32)

    # anchor = F.normalize(embed(anchor), dim=-1)
    a_n = a * jnp.minimum(lax.rsqrt(jnp.sum(a * a, axis=-1, keepdims=True)), inv_eps)
    a_n = a_n[:, None, :]                                              # (BA, 1, E)

    # pos/neg = F.normalize(embed(.), dim=-2): per-channel norm over the valid rows;
    # the per-channel 1/norm is folded into the anchor vector (same value).
    pe = p * pmask
    a_vs_pos = a_n * jnp.minimum(
        lax.rsqrt(jnp.sum(pe * pe, axis=1, keepdims=True)), inv_eps)   # (BA, 1, E)
    ne = n * nmask
    a_vs_neg = a_n * jnp.minimum(
        lax.rsqrt(jnp.sum(ne * ne, axis=1, keepdims=True)), inv_eps)   # (BA, 1, E)

    # each_A_i = neg @ anchor / T; NB: the reference subtracts the max but never adds
    # it back -- reproduced exactly (do not "fix").
    each = jnp.sum(ne * a_vs_neg, axis=-1, keepdims=True) * inv_t      # (BA, N, 1)
    a_max = jnp.max(jnp.where(nmask_b, each, -1e30), axis=1, keepdims=True)
    exps = jnp.where(nmask_b, jnp.exp(each - a_max), 0.0)
    log_sum = jnp.log(jnp.sum(exps, axis=1, keepdims=True))            # (BA, 1, 1)

    numer = jnp.sum(pe * a_vs_pos, axis=-1, keepdims=True) * inv_t     # (BA, P, 1)
    log_prob = (numer - log_sum) * pmask
    # exact divide (once per block -> effectively free; avoids approx-reciprocal error)
    mean_lp = jnp.sum(log_prob, axis=1) / pc.astype(jnp.float32)       # (BA, 1)
    loss = -(TEMPERATURE / BASE_TEMPERATURE) * mean_lp                 # (BA, 1)

    out_ref[...] = jnp.broadcast_to(loss, out_ref.shape)               # lane-dense store


def _loss_pallas(pcnt, ncnt, a_emb, p_emb, n_emb, *, block_a, vmem_limit):
    a_pad, e = a_emb.shape
    p_max = p_emb.shape[1]
    n_max = n_emb.shape[1]
    num_blocks = a_pad // block_a
    return pl.pallas_call(
        _loss_kernel,
        out_shape=jax.ShapeDtypeStruct((a_pad, 128), jnp.float32),
        grid=(num_blocks,),
        in_specs=[
            pl.BlockSpec((block_a, 1), lambda i: (i, 0)),              # positive counts
            pl.BlockSpec((block_a, 1), lambda i: (i, 0)),              # negative counts
            pl.BlockSpec((block_a, e), lambda i: (i, 0)),              # anchors (bf16)
            pl.BlockSpec((block_a, p_max, e), lambda i: (i, 0, 0)),    # positives (bf16)
            pl.BlockSpec((block_a, n_max, e), lambda i: (i, 0, 0)),    # negatives (bf16)
        ],
        out_specs=pl.BlockSpec((block_a, 128), lambda i: (i, 0)),      # per-anchor losses
        compiler_params=pltpu.CompilerParams(
            dimension_semantics=("parallel",),     # independent blocks -> 2 TCs on v7x
            vmem_limit_bytes=vmem_limit),
    )(pcnt, ncnt, a_emb, p_emb, n_emb)


def _pick_block_a(a_n, p_max, n_max, vmem_limit):
    """Size the anchor block from the VMEM budget: double-buffered bf16 input slabs plus
    a few f32-sized temporaries inside the body."""
    per_anchor = (2 * (1 + p_max + n_max) * EMBED * 2      # bf16 inputs, 2 buffers
                  + 3 * (p_max + n_max) * EMBED * 4)       # ~3 f32 temporaries
    cap = max(16, (vmem_limit // 2) // max(per_anchor, 1))
    cap = max(16, (cap // 16) * 16)
    block_a = min(256, cap, _round_up(a_n, 16))
    return max(16, (block_a // 16) * 16)


# ------------------------------ full forward glue -----------------------------
def democracy_loss_pallas(anchors, pos_list, neg_list, w1, b1, w2, b2):
    """anchors: (A, *EX_SHAPE); pos_list / neg_list: length-A lists of (k_i, *EX_SHAPE)."""
    a_n = anchors.shape[0]
    feat = int(np.prod(anchors.shape[1:]))
    anch = np.asarray(anchors, np.float32).reshape(a_n, feat)
    pos_f = [np.asarray(p, np.float32).reshape(p.shape[0], feat) for p in pos_list]
    neg_f = [np.asarray(n, np.float32).reshape(n.shape[0], feat) for n in neg_list]

    # dedupe: every distinct example is embedded exactly once
    rows = np.concatenate([anch] + pos_f + neg_f, axis=0)
    uniq, inv = np.unique(rows, axis=0, return_inverse=True)
    inv = np.asarray(inv, np.int32).reshape(-1)
    n_uniq = uniq.shape[0]
    a_ids = inv[:a_n]
    off = a_n
    pos_ids, neg_ids = [], []
    for p in pos_f:
        pos_ids.append(inv[off:off + p.shape[0]]); off += p.shape[0]
    for n in neg_f:
        neg_ids.append(inv[off:off + n.shape[0]]); off += n.shape[0]

    vmem_limit = _vmem_limit_bytes()
    tm, tk = _pick_embed_tiles(n_uniq, feat, vmem_limit)
    u_pad = _round_up(n_uniq, tm)
    f_pad = _round_up(feat, tk)

    p_max = max(16, _round_up(max(p.shape[0] for p in pos_ids), 16))
    n_max = max(16, _round_up(max(n.shape[0] for n in neg_ids), 16))
    block_a = _pick_block_a(a_n, p_max, n_max, vmem_limit)
    a_pad = _round_up(a_n, block_a)

    x = np.zeros((u_pad, f_pad), np.float32)
    x[:n_uniq, :feat] = uniq
    w1p = np.zeros((f_pad, HIDDEN), np.float32)
    w1p[:feat] = np.asarray(w1, np.float32)

    pos_idx = np.zeros((a_pad, p_max), np.int32)
    neg_idx = np.zeros((a_pad, n_max), np.int32)
    pcnt = np.ones((a_pad, 1), np.int32)     # padded anchors: 1 dummy row, sliced off below
    ncnt = np.ones((a_pad, 1), np.int32)
    a_idx = np.zeros((a_pad,), np.int32)
    a_idx[:a_n] = a_ids
    for i in range(a_n):
        pi, ni = pos_ids[i], neg_ids[i]
        pos_idx[i, :pi.shape[0]] = pi
        pcnt[i, 0] = pi.shape[0]
        neg_idx[i, :ni.shape[0]] = ni
        ncnt[i, 0] = ni.shape[0]

    # stage 1: batched, K-tiled embed MLP (bf16 MXU inputs, f32 accumulation)
    emb = _embed_pallas(
        jnp.asarray(x).astype(MATMUL_DTYPE),
        jnp.asarray(w1p).astype(MATMUL_DTYPE),
        jnp.asarray(b1, jnp.float32).reshape(1, HIDDEN),
        jnp.asarray(w2).astype(MATMUL_DTYPE),
        jnp.asarray(b2, jnp.float32).reshape(1, EMBED),
        tm=tm, tk=tk, vmem_limit=vmem_limit)                  # (u_pad, EMBED) f32

    # bf16 loss inputs halve HBM/VMEM traffic of the per-anchor slabs.
    # TODO(synk): these gathers could be fused into stage 2 via scalar-prefetched indices
    # + a manual DMA gather from `emb` kept in HBM; kept as plain XLA takes here.
    emb_bf = emb.astype(LOSS_INPUT_DTYPE)
    a_emb = jnp.take(emb_bf, jnp.asarray(a_idx), axis=0)      # (a_pad, EMBED)
    p_emb = jnp.take(emb_bf, jnp.asarray(pos_idx), axis=0)    # (a_pad, p_max, EMBED)
    n_emb = jnp.take(emb_bf, jnp.asarray(neg_idx), axis=0)    # (a_pad, n_max, EMBED)

    # stage 2: vectorized contrastive loss, per-anchor partials; final mean in XLA
    per_anchor = _loss_pallas(jnp.asarray(pcnt), jnp.asarray(ncnt),
                              a_emb, p_emb, n_emb,
                              block_a=block_a, vmem_limit=vmem_limit)
    return jnp.sum(per_anchor[:a_n, 0]) / a_n                 # torch.mean over anchors


# --------------- host-side (NumPy) port of the ragged selection --------------
# TODO(synk): data-dependent ragged selection over Python lists/dicts has no clean
# Pallas equivalent; it is reproduced exactly on the host and fed to the kernels padded.
def get_hard_negs_n_positives(examples_to_be_corrected, wrong_closest_pair, positive_samples_of):
    num_examples = len(examples_to_be_corrected)
    hard_negs, pos_example = [], []
    top1 = wrong_closest_pair[:, 0]
    top2 = wrong_closest_pair[:, 1]
    for i in range(num_examples):
        negs_i = [examples_to_be_corrected[j][None]
                  for j in range(num_examples) if top1[j] == top2[i]]
        base = positive_samples_of[int(top1[i])]
        if len(negs_i) != 0:
            hard_negs.append(np.concatenate([base, np.concatenate(negs_i, axis=0)], axis=0))
        else:
            hard_negs.append(base)
        pos_example.append(positive_samples_of[int(top2[i])])
    return pos_example, hard_negs


def get_pos_n_neg_examples(label, samples_f, class_f, idx_f, samples_c, class_c, idx_c):
    top1 = class_c[:, 0]
    top2 = class_c[:, 1]
    cond = (top1 != label[idx_c]) & (top2 == label[idx_c])
    wrong_closest_pair = class_c[cond]
    examples_to_be_corrected = samples_c[cond]
    cond = top1 == label[idx_c]
    correct_closest_pair = class_c[cond]
    correct_examples_to_be_pushed_apart = samples_c[cond]
    top1f = class_f[:, 0]
    condf = top1f == label[idx_f]
    correct_further_pair = class_f[condf]
    correct_samples_of_further_pairs = samples_f[condf]
    positive_samples_of = {}
    unique_classes = np.unique(np.concatenate(
        [wrong_closest_pair.flatten(), correct_closest_pair.flatten()]))
    for uc in unique_classes:
        positive_samples_of[int(uc)] = correct_samples_of_further_pairs[
            correct_further_pair[:, 0] == uc]
    pos_example, hard_negs = get_hard_negs_n_positives(
        examples_to_be_corrected, wrong_closest_pair, positive_samples_of)
    examples_to_be_corrected = np.concatenate(
        [examples_to_be_corrected, correct_examples_to_be_pushed_apart], axis=0)
    for i in range(len(correct_examples_to_be_pushed_apart)):
        pos_example.append(positive_samples_of[int(correct_closest_pair[i, 0])])
        hard_negs.append(positive_samples_of[int(correct_closest_pair[i, 1])])
    return examples_to_be_corrected, pos_example, hard_negs


# ------------------------ NumPy reference of `signatures` --------------------
def _embed_np(x, w1, b1, w2, b2):
    h = np.maximum(x @ w1 + b1, 0.0)
    return h @ w2 + b2


def signatures_reference(anchors, pos_list, neg_list, w1, b1, w2, b2):
    losses = []
    for i in range(anchors.shape[0]):
        P, N = pos_list[i], neg_list[i]
        if P.shape[0] == 0 or N.shape[0] == 0:
            continue
        pe = _embed_np(P.reshape(P.shape[0], -1).astype(np.float64), w1, b1, w2, b2)
        pe = pe / np.maximum(np.linalg.norm(pe, axis=-2, keepdims=True), EPS)
        ne = _embed_np(N.reshape(N.shape[0], -1).astype(np.float64), w1, b1, w2, b2)
        ne = ne / np.maximum(np.linalg.norm(ne, axis=-2, keepdims=True), EPS)
        ae = _embed_np(anchors[i].reshape(1, -1).astype(np.float64), w1, b1, w2, b2)[0]
        ae = ae / max(np.linalg.norm(ae), EPS)
        each = ne @ ae / TEMPERATURE
        m = each.max()
        log_sum = np.log(np.exp(each - m).sum())     # max never added back (as reference)
        numer = pe @ ae / TEMPERATURE
        log_prob = numer - log_sum
        mean_lp = log_prob.sum() / numer.shape[-1]
        losses.append(-(TEMPERATURE / BASE_TEMPERATURE) * mean_lp)
    return float(np.mean(losses)) if losses else 0.0


# ----------------------------------- main ------------------------------------
if __name__ == "__main__":
    key = jax.random.PRNGKey(0)
    kw1, kb1, kw2, kb2, ksf, ksc = jax.random.split(key, 6)

    # deterministic "nn.Linear" params, stored (in, out) for x @ W + b
    lim1 = 1.0 / np.sqrt(F_IN)
    w1 = jax.random.uniform(kw1, (F_IN, HIDDEN), jnp.float32, -lim1, lim1)
    b1 = jax.random.uniform(kb1, (1, HIDDEN), jnp.float32, -lim1, lim1)
    lim2 = 1.0 / np.sqrt(HIDDEN)
    w2 = jax.random.uniform(kw2, (HIDDEN, EMBED), jnp.float32, -lim2, lim2)
    b2 = jax.random.uniform(kb2, (1, EMBED), jnp.float32, -lim2, lim2)

    # synthetic forward() inputs (label, further pairs, closest pairs)
    further_labels = np.array([0, 0, 0, 1, 1, 1, 2, 2, 2, 3, 3, 3], np.int32)
    closest_labels = np.array([0, 1, 2, 2, 3], np.int32)
    label = np.concatenate([further_labels, closest_labels])
    idx_further = np.arange(len(further_labels), dtype=np.int32)
    idx_closest = len(further_labels) + np.arange(len(closest_labels), dtype=np.int32)
    class_further = np.stack([further_labels, (further_labels + 1) % 4], axis=1).astype(np.int32)
    class_closest = np.array([[1, 0], [0, 1], [3, 2], [2, 3], [3, 1]], np.int32)
    samples_further = np.asarray(
        jax.random.normal(ksf, (len(further_labels), *EX_SHAPE), jnp.float32))
    samples_closest = np.asarray(
        jax.random.normal(ksc, (len(closest_labels), *EX_SHAPE), jnp.float32))

    anchors, pos_list, neg_list = get_pos_n_neg_examples(
        label, samples_further, class_further, idx_further,
        samples_closest, class_closest, idx_closest)

    # drop anchors that the reference skips (empty positives or negatives)
    keep = [i for i in range(anchors.shape[0])
            if pos_list[i].shape[0] > 0 and neg_list[i].shape[0] > 0]
    if not keep:
        print("skipped...")
        print("KERNEL_OK")
        raise SystemExit(0)
    anchors = anchors[keep]
    pos_list = [pos_list[i] for i in keep]
    neg_list = [neg_list[i] for i in keep]

    loss = democracy_loss_pallas(anchors, pos_list, neg_list, w1, b1, w2, b2)
    loss = jax.block_until_ready(loss)

    ref = signatures_reference(
        anchors, pos_list, neg_list,
        np.asarray(w1, np.float64), np.asarray(b1, np.float64),
        np.asarray(w2, np.float64), np.asarray(b2, np.float64))
    # Tolerance accounts for bf16 MXU inputs (f32 accumulation) and bf16 stage-2
    # embedding slabs vs the float64 reference.
    np.testing.assert_allclose(float(loss), ref, rtol=5e-2, atol=2.5e-2)
    print("KERNEL_OK")
</pallas_src>

<mosaic_0001>
module attributes {stable_mosaic.version = 11 : i64} {
  func.func @_embed_kernel(%arg0: i32, %arg1: i32, %arg2: memref<32x384xbf16, #tpu.memory_space<vmem>>, %arg3: memref<384x128xbf16, #tpu.memory_space<vmem>>, %arg4: memref<1x128xf32, #tpu.memory_space<vmem>>, %arg5: memref<128x128xbf16, #tpu.memory_space<vmem>>, %arg6: memref<1x128xf32, #tpu.memory_space<vmem>>, %arg7: memref<32x128xf32, #tpu.memory_space<vmem>>, %arg8: memref<32x128xf32, #tpu.memory_space<vmem>>) attributes {dimension_semantics = [#tpu.dimension_semantics<arbitrary>, #tpu.dimension_semantics<arbitrary>], iteration_bounds = array<i64: 1, 1>, scalar_prefetch = 0 : i64, scratch_operands = 1 : i64, tpu.core_type = #tpu.core_type<tc>, window_params = [{transform_indices = @transform_0, window_bounds = array<i64: 32, 384>}, {transform_indices = @transform_1, window_bounds = array<i64: 384, 128>}, {pipeline_mode = #tpu.pipeline_mode<synchronous>, transform_indices = @transform_2, window_bounds = array<i64: 1, 128>}, {pipeline_mode = #tpu.pipeline_mode<synchronous>, transform_indices = @transform_3, window_bounds = array<i64: 128, 128>}, {pipeline_mode = #tpu.pipeline_mode<synchronous>, transform_indices = @transform_4, window_bounds = array<i64: 1, 128>}, {pipeline_mode = #tpu.pipeline_mode<synchronous>, transform_indices = @transform_5, window_bounds = array<i64: 32, 128>}]} {
    %c32_i32 = arith.constant 32 : i32
    %0 = arith.muli %arg1, %c32_i32 : i32
    %1 = tpu.assume_multiple %0, 16 : i32
    %c0_i32 = arith.constant 0 : i32
    %2 = arith.cmpi eq, %arg0, %c0_i32 : i32
    %3 = arith.extui %2 : i1 to i32
    %c0_i32_0 = arith.constant 0 : i32
    %4 = arith.cmpi ne, %3, %c0_i32_0 : i32
    scf.if %4 {
      %cst_8 = arith.constant 0.000000e+00 : f32
      %16 = vector.broadcast %cst_8 : f32 to vector<32x128xf32>
      %17 = arith.index_cast %1 : i32 to index
      %c0_9 = arith.constant 0 : index
      %18 = vector.load %arg8[%17, %c0_9] : memref<32x128xf32, #tpu.memory_space<vmem>>, vector<32x128xf32>
      tpu.vector_store %arg8[%17, %c0_9], %16 {strides = array<i32>} : memref<32x128xf32, #tpu.memory_space<vmem>>, vector<32x128xf32>,
    } else {
    }
    %5 = arith.index_cast %1 : i32 to index
    %c0 = arith.constant 0 : index
    %6 = vector.load %arg8[%5, %c0] : memref<32x128xf32, #tpu.memory_space<vmem>>, vector<32x128xf32>
    %c0_1 = arith.constant 0 : index
    %c0_2 = arith.constant 0 : index
    %7 = vector.load %arg2[%c0_1, %c0_2] : memref<32x384xbf16, #tpu.memory_space<vmem>>, vector<32x384xbf16>
    %c0_3 = arith.constant 0 : index
    %c0_4 = arith.constant 0 : index
    %8 = vector.load %arg3[%c0_3, %c0_4] : memref<384x128xbf16, #tpu.memory_space<vmem>>, vector<384x128xbf16>
    %cst = arith.constant dense<0.000000e+00> : vector<32x128xf32>
    %9 = tpu.matmul %7, %8, %cst {dimension_numbers = #tpu.dot_dimension_numbers<[1], [0], [0], [1], [0, 0, 1, 1], [], []>} : vector<32x384xbf16>, vector<384x128xbf16>, vector<32x128xf32> -> vector<32x128xf32>
    %10 = arith.addf %6, %9 : vector<32x128xf32>
    %11 = arith.index_cast %1 : i32 to index
    %c0_5 = arith.constant 0 : index
    %12 = vector.load %arg8[%11, %c0_5] : memref<32x128xf32, #tpu.memory_space<vmem>>, vector<32x128xf32>
    tpu.vector_store %arg8[%11, %c0_5], %10 {strides = array<i32>} : memref<32x128xf32, #tpu.memory_space<vmem>>, vector<32x128xf32>,
    %c0_i32_6 = arith.constant 0 : i32
    %13 = arith.cmpi eq, %arg0, %c0_i32_6 : i32
    %14 = arith.extui %13 : i1 to i32
    %c0_i32_7 = arith.constant 0 : i32
    %15 = arith.cmpi ne, %14, %c0_i32_7 : i32
    scf.if %15 {
      %16 = arith.index_cast %1 : i32 to index
      %c0_8 = arith.constant 0 : index
      %17 = vector.load %arg8[%16, %c0_8] : memref<32x128xf32, #tpu.memory_space<vmem>>, vector<32x128xf32>
      %c0_9 = arith.constant 0 : index
      %c0_10 = arith.constant 0 : index
      %18 = vector.load %arg4[%c0_9, %c0_10] : memref<1x128xf32, #tpu.memory_space<vmem>>, vector<1x128xf32>
      %19 = vector.broadcast %18 : vector<1x128xf32> to vector<32x128xf32>
      %20 = arith.addf %17, %19 : vector<32x128xf32>
      %cst_11 = arith.constant 0.000000e+00 : f32
      %21 = vector.broadcast %cst_11 : f32 to vector<32x128xf32>
      %22 = arith.maximumf %20, %21 : vector<32x128xf32>
      %23 = arith.truncf %22 : vector<32x128xf32> to vector<32x128xbf16>
      %c0_12 = arith.constant 0 : index
      %c0_13 = arith.constant 0 : index
      %24 = vector.load %arg5[%c0_12, %c0_13] : memref<128x128xbf16, #tpu.memory_space<vmem>>, vector<128x128xbf16>
      %cst_14 = arith.constant dense<0.000000e+00> : vector<32x128xf32>
      %25 = tpu.matmul %23, %24, %cst_14 {dimension_numbers = #tpu.dot_dimension_numbers<[1], [0], [0], [1], [0, 0, 1, 1], [], []>} : vector<32x128xbf16>, vector<128x128xbf16>, vector<32x128xf32> -> vector<32x128xf32>
      %c0_15 = arith.constant 0 : index
      %c0_16 = arith.constant 0 : index
      %26 = vector.load %arg6[%c0_15, %c0_16] : memref<1x128xf32, #tpu.memory_space<vmem>>, vector<1x128xf32>
      %27 = vector.broadcast %26 : vector<1x128xf32> to vector<32x128xf32>
      %28 = arith.addf %25, %27 : vector<32x128xf32>
      %29 = arith.index_cast %1 : i32 to index
      %c0_17 = arith.constant 0 : index
      %30 = vector.load %arg7[%29, %c0_17] : memref<32x128xf32, #tpu.memory_space<vmem>>, vector<32x128xf32>
      tpu.vector_store %arg7[%29, %c0_17], %28 {strides = array<i32>} : memref<32x128xf32, #tpu.memory_space<vmem>>, vector<32x128xf32>,
    } else {
    }
    return
  }
  func.func @transform_0(%arg0: i32, %arg1: i32) -> (i32, i32) {
    %c0_i32 = arith.constant 0 : i32
    return %arg1, %arg0 : i32, i32
  }
  func.func @transform_1(%arg0: i32, %arg1: i32) -> (i32, i32) {
    %c0_i32 = arith.constant 0 : i32
    %c0_i32_0 = arith.constant 0 : i32
    return %arg0, %c0_i32 : i32, i32
  }
  func.func @transform_2(%arg0: i32, %arg1: i32) -> (i32, i32) {
    %c0_i32 = arith.constant 0 : i32
    %c0_i32_0 = arith.constant 0 : i32
    %c0_i32_1 = arith.constant 0 : i32
    return %c0_i32, %c0_i32_0 : i32, i32
  }
  func.func @transform_3(%arg0: i32, %arg1: i32) -> (i32, i32) {
    %c0_i32 = arith.constant 0 : i32
    %c0_i32_0 = arith.constant 0 : i32
    %c0_i32_1 = arith.constant 0 : i32
    return %c0_i32, %c0_i32_0 : i32, i32
  }
  func.func @transform_4(%arg0: i32, %arg1: i32) -> (i32, i32) {
    %c0_i32 = arith.constant 0 : i32
    %c0_i32_0 = arith.constant 0 : i32
    %c0_i32_1 = arith.constant 0 : i32
    return %c0_i32, %c0_i32_0 : i32, i32
  }
  func.func @transform_5(%arg0: i32, %arg1: i32) -> (i32, i32) {
    %c0_i32 = arith.constant 0 : i32
    %c0_i32_0 = arith.constant 0 : i32
    %c0_i32_1 = arith.constant 0 : i32
    return %c0_i32, %c0_i32_0 : i32, i32
  }
}

</mosaic_0001>

<llo_original>
// kernel: tpu_custom_call.1
$region0: #{tpu_custom_call.1}
  #allocation0 [shape = 'u32[]', space=smem, size = 0x4, offset = 0x4, fixed_abs, tag = 'smem constant byte address 0x4 - core index']
  #allocation1 [shape = 'u32[144,128]{1,0:T(1,128)}', space=vmem, size = 0x12000, scoped, tag = 'internal scratch']
  #allocation2 [shape = 'f32[32,128]{1,0:T(8,128)}', space=vmem, size = 0x4000, scoped, tag = 'scratch operand']
  %s0 = inlined_call_operand.hbm [shape: bf16[32,384], index: 0, kind: input, shape index: {}]
  %s1 = inlined_call_operand.hbm [shape: bf16[384,128], index: 1, kind: input, shape index: {}]
  %s2 = inlined_call_operand.vmem [shape: f32[1,128], index: 2, kind: input, shape index: {}]
  %s3 = inlined_call_operand.hbm [shape: bf16[128,128], index: 3, kind: input, shape index: {}]
  %s4 = inlined_call_operand.vmem [shape: f32[1,128], index: 4, kind: input, shape index: {}]
  %s5 = inlined_call_operand.hbm [shape: f32[32,128], index: 5, kind: output, shape index: {}]
  %s6 = sld [smem:[#allocation0]]
  $region50: #{tpu_custom_call.1} parent=0
    _
  %s8 = ssub.s32 1, %s6
  %s9 = scalar_select 0, %s8, %s6
  $region1: #{tpu_custom_call.1} parent=0
    #allocation3 [shape = 'u8[24576]{0}', space=vmem, size = 0x6000, scoped, tag = 'input window, operand 0, single buffered']
    #allocation4 [shape = 's32[1]{0}', space=sflag, size = 0x4, scoped, tag = 'scoped memory for tpu_custom_call.1']
    #allocation5 [shape = 's32[1]{0}', space=sflag, size = 0x4, scoped, tag = 'scoped memory for tpu_custom_call.1']
    #allocation6 [shape = 'u8[98304]{0}', space=vmem, size = 0x18000, scoped, tag = 'input window, operand 1, single buffered']
    #allocation7 [shape = 's32[1]{0}', space=sflag, size = 0x4, scoped, tag = 'scoped memory for tpu_custom_call.1']
    #allocation8 [shape = 'u8[32768]{0}', space=vmem, size = 0x8000, scoped, tag = 'input window, operand 3, single buffered']
    #allocation9 [shape = 'u8[16384]{0}', space=vmem, size = 0x4000, scoped, tag = 'output window, operand 0, single buffered']
    %10 = vsyncpa [#allocation4], 0
    %11 = vsyncpa [#allocation7], 0
    %12 = vsyncpa [#allocation5], 0
    // Predicated region
    $region2: #{tpu_custom_call.1} parent=1 // pred_check
      _
    $region3: #{tpu_custom_call.1} parent=1 // pred_check_branch
      %14 = sbr.rel (0) target = $region5
    $region4: #{tpu_custom_call.1} parent=1 // pred_region
      %s16 = ssub.s32 768, 768
      %17 = vsyncadd [#allocation4], %s16
      %s18 = sshll.u32 [#allocation3], 4
      %s19 = int_to_ptr.vmem [resolvable:$true] %s18
      %24 = dma.hbm_to_vmem [thread:$0]  %s0, 768, %s19, [#allocation4], 192, 192, 12
    $region5: #{tpu_custom_call.1} parent=1 // pred_fallthru
      _
    // Predicated region
    $region6: #{tpu_custom_call.1} parent=1 // pred_check
      _
    $region7: #{tpu_custom_call.1} parent=1 // pred_check_branch
      %26 = sbr.rel (0) target = $region9
    $region8: #{tpu_custom_call.1} parent=1 // pred_region
      %s28 = ssub.s32 3072, 3072
      %29 = vsyncadd [#allocation7], %s28
      %s30 = sshll.u32 [#allocation6], 4
      %s31 = int_to_ptr.vmem [resolvable:$true] %s30
      %36 = dma.hbm_to_vmem [thread:$0]  %s1, 3072, %s31, [#allocation7], 64, 64, 4
    $region9: #{tpu_custom_call.1} parent=1 // pred_fallthru
      _
    // Predicated region
    $region10: #{tpu_custom_call.1} parent=1 // pred_check
      _
    $region11: #{tpu_custom_call.1} parent=1 // pred_check_branch
      %38 = sbr.rel (0) target = $region13
    $region12: #{tpu_custom_call.1} parent=1 // pred_region
      _
    $region13: #{tpu_custom_call.1} parent=1 // pred_fallthru
      _
    // Predicated region
    $region14: #{tpu_custom_call.1} parent=1 // pred_check
      _
    $region15: #{tpu_custom_call.1} parent=1 // pred_check_branch
      %40 = sbr.rel (0) target = $region17
    $region16: #{tpu_custom_call.1} parent=1 // pred_region
      %s42 = ssub.s32 1024, 1024
      %43 = vsyncadd [#allocation7], %s42
      %s44 = sshll.u32 [#allocation8], 4
      %s45 = int_to_ptr.vmem [resolvable:$true] %s44
      %50 = dma.hbm_to_vmem [thread:$0]  %s3, 1024, %s45, [#allocation7], 64, 64, 4
    $region17: #{tpu_custom_call.1} parent=1 // pred_fallthru
      _
    // Predicated region
    $region18: #{tpu_custom_call.1} parent=1 // pred_check
      _
    $region19: #{tpu_custom_call.1} parent=1 // pred_check_branch
      %52 = sbr.rel (0) target = $region21
    $region20: #{tpu_custom_call.1} parent=1 // pred_region
      _
    $region21: #{tpu_custom_call.1} parent=1 // pred_fallthru
      _
    // Predicated region
    $region22: #{tpu_custom_call.1} parent=1 // pred_check
      _
    $region23: #{tpu_custom_call.1} parent=1 // pred_check_branch
      %54 = sbr.rel (0) target = $region25
    $region24: #{tpu_custom_call.1} parent=1 // pred_region
      %55 = dma.done [#allocation4], 768
    $region25: #{tpu_custom_call.1} parent=1 // pred_fallthru
      _
    // Predicated region
    $region26: #{tpu_custom_call.1} parent=1 // pred_check
      _
    $region27: #{tpu_custom_call.1} parent=1 // pred_check_branch
      %57 = sbr.rel (0) target = $region29
    $region28: #{tpu_custom_call.1} parent=1 // pred_region
      %58 = dma.done [#allocation7], 3072
    $region29: #{tpu_custom_call.1} parent=1 // pred_fallthru
      _
    // Predicated region
    $region30: #{tpu_custom_call.1} parent=1 // pred_check
      _
    $region31: #{tpu_custom_call.1} parent=1 // pred_check_branch
      %60 = sbr.rel (0) target = $region33
    $region32: #{tpu_custom_call.1} parent=1 // pred_region
      %61 = dma.done [#allocation7], 1024
    $region33: #{tpu_custom_call.1} parent=1 // pred_fallthru
      _
    %s63 = smul.u32 0, 32
    %p64 = scmp.eq.s32.totalorder 0, 0
    // Predicated region
    $region34: #{tpu_custom_call.1} parent=1 // pred_check
      %p65 = pneg %p64
    $region35: #{tpu_custom_call.1} parent=1 // pred_check_branch
      %67 = sbr.rel (%p65) target = $region37
    $region36: #{tpu_custom_call.1} parent=1 // pred_region
      %s68 = scalar_lea.vmem [#allocation2], %s63
      %69 = vst [vmem:[%s68] sm:$0xff] 0.0
      %70 = vst [vmem:[%s68 + $0x8] sm:$0xff] 0.0
      %71 = vst [vmem:[%s68 + $0x10] sm:$0xff] 0.0
      %72 = vst [vmem:[%s68 + $0x18] sm:$0xff] 0.0
    $region37: #{tpu_custom_call.1} parent=1 // pred_fallthru
      _
    %s73 = scalar_lea.vmem [#allocation2], %s63
    %v74 = vld [vmem:[%s73] sm:$0xff]
    %v75 = vld [vmem:[%s73 + $0x8] sm:$0xff]
    %v76 = vld [vmem:[%s73 + $0x10] sm:$0xff]
    %v77 = vld [vmem:[%s73 + $0x18] sm:$0xff]
    %v78 = vld [vmem:[#allocation3] sm:$0xff]
    %v79 = vld [vmem:[#allocation3 + $0x8] sm:$0xf]
    %v80 = vld [vmem:[#allocation3 + $0xc] sm:$0xff]
    %v81 = vld [vmem:[#allocation3 + $0x14] sm:$0xf]
    %v82 = vld [vmem:[#allocation3 + $0x18] sm:$0xff]
    %v83 = vld [vmem:[#allocation3 + $0x20] sm:$0xf]
    %v84 = vld [vmem:[#allocation3 + $0x24] sm:$0xff]
    %v85 = vld [vmem:[#allocation3 + $0x2c] sm:$0xf]
    %v86 = vld [vmem:[#allocation6] sm:$0xf]
    %v87 = vld [vmem:[#allocation6 + $0x4] sm:$0xf]
    %v88 = vld [vmem:[#allocation6 + $0x8] sm:$0xf]
    %v89 = vld [vmem:[#allocation6 + $0xc] sm:$0xf]
    %v90 = vld [vmem:[#allocation6 + $0x10] sm:$0xf]
    %v91 = vld [vmem:[#allocation6 + $0x14] sm:$0xf]
    %v92 = vld [vmem:[#allocation6 + $0x18] sm:$0xf]
    %v93 = vld [vmem:[#allocation6 + $0x1c] sm:$0xf]
    %v94 = vld [vmem:[#allocation6 + $0x20] sm:$0xf]
    %v95 = vld [vmem:[#allocation6 + $0x24] sm:$0xf]
    %v96 = vld [vmem:[#allocation6 + $0x28] sm:$0xf]
    %v97 = vld [vmem:[#allocation6 + $0x2c] sm:$0xf]
    %v98 = vld [vmem:[#allocation6 + $0x30] sm:$0xf]
    %v99 = vld [vmem:[#allocation6 + $0x34] sm:$0xf]
    %v100 = vld [vmem:[#allocation6 + $0x38] sm:$0xf]
    %v101 = vld [vmem:[#allocation6 + $0x3c] sm:$0xf]
    %v102 = vld [vmem:[#allocation6 + $0x40] sm:$0xf]
    %v103 = vld [vmem:[#allocation6 + $0x44] sm:$0xf]
    %v104 = vld [vmem:[#allocation6 + $0x48] sm:$0xf]
    %v105 = vld [vmem:[#allocation6 + $0x4c] sm:$0xf]
    %v106 = vld [vmem:[#allocation6 + $0x50] sm:$0xf]
    %v107 = vld [vmem:[#allocation6 + $0x54] sm:$0xf]
    %v108 = vld [vmem:[#allocation6 + $0x58] sm:$0xf]
    %v109 = vld [vmem:[#allocation6 + $0x5c] sm:$0xf]
    %v110 = vld [vmem:[#allocation6 + $0x60] sm:$0xf]
    %v111 = vld [vmem:[#allocation6 + $0x64] sm:$0xf]
    %v112 = vld [vmem:[#allocation6 + $0x68] sm:$0xf]
    %v113 = vld [vmem:[#allocation6 + $0x6c] sm:$0xf]
    %v114 = vld [vmem:[#allocation6 + $0x70] sm:$0xf]
    %v115 = vld [vmem:[#allocation6 + $0x74] sm:$0xf]
    %v116 = vld [vmem:[#allocation6 + $0x78] sm:$0xf]
    %v117 = vld [vmem:[#allocation6 + $0x7c] sm:$0xf]
    %v118 = vld [vmem:[#allocation6 + $0x80] sm:$0xf]
    %v119 = vld [vmem:[#allocation6 + $0x84] sm:$0xf]
    %v120 = vld [vmem:[#allocation6 + $0x88] sm:$0xf]
    %v121 = vld [vmem:[#allocation6 + $0x8c] sm:$0xf]
    %v122 = vld [vmem:[#allocation6 + $0x90] sm:$0xf]
    %v123 = vld [vmem:[#allocation6 + $0x94] sm:$0xf]
    %v124 = vld [vmem:[#allocation6 + $0x98] sm:$0xf]
    %v125 = vld [vmem:[#allocation6 + $0x9c] sm:$0xf]
    %v126 = vld [vmem:[#allocation6 + $0xa0] sm:$0xf]
    %v127 = vld [vmem:[#allocation6 + $0xa4] sm:$0xf]
    %v128 = vld [vmem:[#allocation6 + $0xa8] sm:$0xf]
    %v129 = vld [vmem:[#allocation6 + $0xac] sm:$0xf]
    %v130 = vld [vmem:[#allocation6 + $0xb0] sm:$0xf]
    %v131 = vld [vmem:[#allocation6 + $0xb4] sm:$0xf]
    %v132 = vld [vmem:[#allocation6 + $0xb8] sm:$0xf]
    %v133 = vld [vmem:[#allocation6 + $0xbc] sm:$0xf]
    %v142 = vunpack.c.l.b16 %v78
    %v143 = vunpack.c.h.b16 %v78
    %v144 = vunpack.c.l.b16 %v79
    %v145 = vunpack.c.l.b16 %v80
    %v146 = vunpack.c.h.b16 %v80
    %v147 = vunpack.c.l.b16 %v81
    %v148 = vunpack.c.l.b16 %v82
    %v149 = vunpack.c.h.b16 %v82
    %v150 = vunpack.c.l.b16 %v83
    %v151 = vunpack.c.l.b16 %v84
    %v152 = vunpack.c.h.b16 %v84
    %v153 = vunpack.c.l.b16 %v85
    %v154 = vpack.c.b16 %v145, %v142
    %v155 = vpack.c.b16 %v146, %v143
    %v156 = vpack.c.b16 %v147, %v144
    %v157 = vpack.c.b16 %v151, %v148
    %v158 = vpack.c.b16 %v152, %v149
    %v159 = vpack.c.b16 %v153, %v150
    %v214 = vunpack.c.l.b16 %v86
    %v215 = vunpack.c.l.b16 %v87
    %v216 = vunpack.c.l.b16 %v88
    %v217 = vunpack.c.l.b16 %v89
    %v218 = vunpack.c.l.b16 %v90
    %v219 = vunpack.c.l.b16 %v91
    %v220 = vunpack.c.l.b16 %v92
    %v221 = vunpack.c.l.b16 %v93
    %v222 = vunpack.c.l.b16 %v94
    %v223 = vunpack.c.l.b16 %v95
    %v224 = vunpack.c.l.b16 %v96
    %v225 = vunpack.c.l.b16 %v97
    %v226 = vunpack.c.l.b16 %v98
    %v227 = vunpack.c.l.b16 %v99
    %v228 = vunpack.c.l.b16 %v100
    %v229 = vunpack.c.l.b16 %v101
    %v230 = vunpack.c.l.b16 %v102
    %v231 = vunpack.c.l.b16 %v103
    %v232 = vunpack.c.l.b16 %v104
    %v233 = vunpack.c.l.b16 %v105
    %v234 = vunpack.c.l.b16 %v106
    %v235 = vunpack.c.l.b16 %v107
    %v236 = vunpack.c.l.b16 %v108
    %v237 = vunpack.c.l.b16 %v109
    %v238 = vunpack.c.l.b16 %v110
    %v239 = vunpack.c.l.b16 %v111
    %v240 = vunpack.c.l.b16 %v112
    %v241 = vunpack.c.l.b16 %v113
    %v242 = vunpack.c.l.b16 %v114
    %v243 = vunpack.c.l.b16 %v115
    %v244 = vunpack.c.l.b16 %v116
    %v245 = vunpack.c.l.b16 %v117
    %v246 = vunpack.c.l.b16 %v118
    %v247 = vunpack.c.l.b16 %v119
    %v248 = vunpack.c.l.b16 %v120
    %v249 = vunpack.c.l.b16 %v121
    %v250 = vunpack.c.l.b16 %v122
    %v251 = vunpack.c.l.b16 %v123
    %v252 = vunpack.c.l.b16 %v124
    %v253 = vunpack.c.l.b16 %v125
    %v254 = vunpack.c.l.b16 %v126
    %v255 = vunpack.c.l.b16 %v127
    %v256 = vunpack.c.l.b16 %v128
    %v257 = vunpack.c.l.b16 %v129
    %v258 = vunpack.c.l.b16 %v130
    %v259 = vunpack.c.l.b16 %v131
    %v260 = vunpack.c.l.b16 %v132
    %v261 = vunpack.c.l.b16 %v133
    %v262 = vpack.c.b16 %v215, %v214
    %v263 = vpack.c.b16 %v217, %v216
    %v264 = vpack.c.b16 %v219, %v218
    %v265 = vpack.c.b16 %v221, %v220
    %v266 = vpack.c.b16 %v223, %v222
    %v267 = vpack.c.b16 %v225, %v224
    %v268 = vpack.c.b16 %v227, %v226
    %v269 = vpack.c.b16 %v229, %v228
    %v270 = vpack.c.b16 %v231, %v230
    %v271 = vpack.c.b16 %v233, %v232
    %v272 = vpack.c.b16 %v235, %v234
    %v273 = vpack.c.b16 %v237, %v236
    %v274 = vpack.c.b16 %v239, %v238
    %v275 = vpack.c.b16 %v241, %v240
    %v276 = vpack.c.b16 %v243, %v242
    %v277 = vpack.c.b16 %v245, %v244
    %v278 = vpack.c.b16 %v247, %v246
    %v279 = vpack.c.b16 %v249, %v248
    %v280 = vpack.c.b16 %v251, %v250
    %v281 = vpack.c.b16 %v253, %v252
    %v282 = vpack.c.b16 %v255, %v254
    %v283 = vpack.c.b16 %v257, %v256
    %v284 = vpack.c.b16 %v259, %v258
    %v285 = vpack.c.b16 %v261, %v260
    %310 = vmatprep.subr.bf16.mxu0 0
    %311 = vmatpush1.bf16.msra.mxu0 %v269
    %312 = vmatprep.subr.bf16.mxu0 0
    %313 = vmatpush1.bf16.msra.mxu0 %v268
    %314 = vmatprep.subr.bf16.mxu0 0
    %315 = vmatpush1.bf16.msra.mxu0 %v267
    %316 = vmatprep.subr.bf16.mxu0 0
    %317 = vmatpush1.bf16.msra.mxu0 %v266
    %318 = vmatprep.subr.bf16.mxu0 0
    %319 = vmatpush1.bf16.msra.mxu0 %v265
    %320 = vmatprep.subr.bf16.mxu0 0
    %321 = vmatpush1.bf16.msra.mxu0 %v264
    %322 = vmatprep.subr.bf16.mxu0 0
    %323 = vmatpush1.bf16.msra.mxu0 %v263
    %324 = vmatprep.subr.bf16.mxu0 0
    %325 = vmatpush1.bf16.msra.mxu0 %v262
    %326 = vmatprep.subr.bf16.mxu0 0
    %327 = vmatpush2.bf16.msra.mxu0 %v277
    %328 = vmatprep.subr.bf16.mxu0 0
    %329 = vmatpush2.bf16.msra.mxu0 %v276
    %330 = vmatprep.subr.bf16.mxu0 0
    %331 = vmatpush2.bf16.msra.mxu0 %v275
    %332 = vmatprep.subr.bf16.mxu0 0
    %333 = vmatpush2.bf16.msra.mxu0 %v274
    %334 = vmatprep.subr.bf16.mxu0 0
    %335 = vmatpush2.bf16.msra.mxu0 %v273
    %336 = vmatprep.subr.bf16.mxu0 0
    %337 = vmatpush2.bf16.msra.mxu0 %v272
    %338 = vmatprep.subr.bf16.mxu0 0
    %339 = vmatpush2.bf16.msra.mxu0 %v271
    %340 = vmatprep.subr.bf16.mxu0 0
    %341 = vmatpush2.bf16.msra.mxu0 %v270
    %342 = vmatprep.mubr.bf16.mxu0 %v155
    %343 = vmatmul.mubr.bf16.gmra.mxu0 %v154
    %v344 = vpop.f32.mrf.mxu0
    %v345 = vadd.f32 0.0, %v344
    %v346 = vpop.f32.mrf.mxu0
    %v347 = vpop.f32.mrf.mxu0
    %v348 = vadd.f32 0.0, %v347
    %v349 = vpop.f32.mrf.mxu0
    %350 = vmatprep.mubr.bf16.mxu0 %v158
    %351 = vmatmul.mubr.bf16.gmra.mxu0 %v157
    %v352 = vpop.f32.mrf.mxu0
    %v353 = vadd.f32 0.0, %v352
    %v354 = vpop.f32.mrf.mxu0
    %v355 = vpop.f32.mrf.mxu0
    %v356 = vadd.f32 0.0, %v355
    %v357 = vpop.f32.mrf.mxu0
    %358 = vdwg.mxu0
    %359 = vmatprep.subr.bf16.mxu0 0
    %360 = vmatpush1.bf16.msra.mxu0 %v285
    %361 = vmatprep.subr.bf16.mxu0 0
    %362 = vmatpush1.bf16.msra.mxu0 %v284
    %363 = vmatprep.subr.bf16.mxu0 0
    %364 = vmatpush1.bf16.msra.mxu0 %v283
    %365 = vmatprep.subr.bf16.mxu0 0
    %366 = vmatpush1.bf16.msra.mxu0 %v282
    %367 = vmatprep.subr.bf16.mxu0 0
    %368 = vmatpush1.bf16.msra.mxu0 %v281
    %369 = vmatprep.subr.bf16.mxu0 0
    %370 = vmatpush1.bf16.msra.mxu0 %v280
    %371 = vmatprep.subr.bf16.mxu0 0
    %372 = vmatpush1.bf16.msra.mxu0 %v279
    %373 = vmatprep.subr.bf16.mxu0 0
    %374 = vmatpush1.bf16.msra.mxu0 %v278
    %375 = vmatprep.subr.bf16.mxu0 0
    %376 = vmatpush2.bf16.msra.mxu0 0
    %377 = vmatprep.subr.bf16.mxu0 0
    %378 = vmatpush2.bf16.msra.mxu0 0
    %379 = vmatprep.subr.bf16.mxu0 0
    %380 = vmatpush2.bf16.msra.mxu0 0
    %381 = vmatprep.subr.bf16.mxu0 0
    %382 = vmatpush2.bf16.msra.mxu0 0
    %383 = vmatprep.subr.bf16.mxu0 0
    %384 = vmatpush2.bf16.msra.mxu0 0
    %385 = vmatprep.subr.bf16.mxu0 0
    %386 = vmatpush2.bf16.msra.mxu0 0
    %387 = vmatprep.subr.bf16.mxu0 0
    %388 = vmatpush2.bf16.msra.mxu0 0
    %389 = vmatprep.subr.bf16.mxu0 0
    %390 = vmatpush2.bf16.msra.mxu0 0
    %391 = vmatprep.mubr.bf16.mxu0 0
    %392 = vmatmul.mubr.bf16.gmra.mxu0 %v156
    %v393 = vpop.f32.mrf.mxu0
    %v394 = vadd.f32 %v345, %v393
    %v395 = vpop.f32.mrf.mxu0
    %v396 = vpop.f32.mrf.mxu0
    %v397 = vadd.f32 %v348, %v396
    %v398 = vpop.f32.mrf.mxu0
    %399 = vmatprep.mubr.bf16.mxu0 0
    %400 = vmatmul.mubr.bf16.gmra.mxu0 %v159
    %v401 = vpop.f32.mrf.mxu0
    %v402 = vadd.f32 %v353, %v401
    %v403 = vpop.f32.mrf.mxu0
    %v404 = vpop.f32.mrf.mxu0
    %v405 = vadd.f32 %v356, %v404
    %v406 = vpop.f32.mrf.mxu0
    %407 = vdwg.mxu0
    %v408 = vadd.f32 %v74, %v394
    %v409 = vadd.f32 %v75, %v397
    %v410 = vadd.f32 %v76, %v402
    %v411 = vadd.f32 %v77, %v405
    %412 = vst [vmem:[%s73] sm:$0xff] %v408
    %413 = vst [vmem:[%s73 + $0x8] sm:$0xff] %v409
    %414 = vst [vmem:[%s73 + $0x10] sm:$0xff] %v410
    %415 = vst [vmem:[%s73 + $0x18] sm:$0xff] %v411
    // Predicated region
    $region38: #{tpu_custom_call.1} parent=1 // pred_check
      %p416 = pneg %p64
    $region39: #{tpu_custom_call.1} parent=1 // pred_check_branch
      %418 = sbr.rel (%p416) target = $region41
    $region40: #{tpu_custom_call.1} parent=1 // pred_region
      %v419 = vld [vmem:[%s73] sm:$0xff]
      %v420 = vld [vmem:[%s73 + $0x8] sm:$0xff]
      %v421 = vld [vmem:[%s73 + $0x10] sm:$0xff]
      %v422 = vld [vmem:[%s73 + $0x18] sm:$0xff]
      %v423 = vld [vmem:[%s2] sm:$0x1]
      %v425 = vlaneseq
      %v426 = vshrl.u32 %v425, 7
      %v427 = vsub.s32 0, %v426
      %v428 = vrot.slane %v423, %v427
      %v430 = vadd.f32 %v419, %v428
      %v431 = vadd.f32 %v420, %v428
      %v432 = vadd.f32 %v421, %v428
      %v433 = vadd.f32 %v422, %v428
      %v434 = vmax.f32 %v430, 0.0
      %v435 = vmax.f32 %v431, 0.0
      %v436 = vmax.f32 %v432, 0.0
      %v437 = vmax.f32 %v433, 0.0
      %v438 = vpack.c.bf16 %v435, %v434
      %v439 = vpack.c.bf16 %v437, %v436
      %v440 = vld [vmem:[#allocation8] sm:$0xf]
      %v441 = vld [vmem:[#allocation8 + $0x4] sm:$0xf]
      %v442 = vld [vmem:[#allocation8 + $0x8] sm:$0xf]
      %v443 = vld [vmem:[#allocation8 + $0xc] sm:$0xf]
      %v444 = vld [vmem:[#allocation8 + $0x10] sm:$0xf]
      %v445 = vld [vmem:[#allocation8 + $0x14] sm:$0xf]
      %v446 = vld [vmem:[#allocation8 + $0x18] sm:$0xf]
      %v447 = vld [vmem:[#allocation8 + $0x1c] sm:$0xf]
      %v448 = vld [vmem:[#allocation8 + $0x20] sm:$0xf]
      %v449 = vld [vmem:[#allocation8 + $0x24] sm:$0xf]
      %v450 = vld [vmem:[#allocation8 + $0x28] sm:$0xf]
      %v451 = vld [vmem:[#allocation8 + $0x2c] sm:$0xf]
      %v452 = vld [vmem:[#allocation8 + $0x30] sm:$0xf]
      %v453 = vld [vmem:[#allocation8 + $0x34] sm:$0xf]
      %v454 = vld [vmem:[#allocation8 + $0x38] sm:$0xf]
      %v455 = vld [vmem:[#allocation8 + $0x3c] sm:$0xf]
      %v456 = vld [vmem:[%s4] sm:$0x1]
      %v458 = vlaneseq
      %v459 = vshrl.u32 %v458, 7
      %v460 = vsub.s32 0, %v459
      %v461 = vrot.slane %v456, %v460
      %v479 = vunpack.c.l.b16 %v440
      %v480 = vunpack.c.l.b16 %v441
      %v481 = vunpack.c.l.b16 %v442
      %v482 = vunpack.c.l.b16 %v443
      %v483 = vunpack.c.l.b16 %v444
      %v484 = vunpack.c.l.b16 %v445
      %v485 = vunpack.c.l.b16 %v446
      %v486 = vunpack.c.l.b16 %v447
      %v487 = vunpack.c.l.b16 %v448
      %v488 = vunpack.c.l.b16 %v449
      %v489 = vunpack.c.l.b16 %v450
      %v490 = vunpack.c.l.b16 %v451
      %v491 = vunpack.c.l.b16 %v452
      %v492 = vunpack.c.l.b16 %v453
      %v493 = vunpack.c.l.b16 %v454
      %v494 = vunpack.c.l.b16 %v455
      %v495 = vpack.c.b16 %v480, %v479
      %v496 = vpack.c.b16 %v482, %v481
      %v497 = vpack.c.b16 %v484, %v483
      %v498 = vpack.c.b16 %v486, %v485
      %v499 = vpack.c.b16 %v488, %v487
      %v500 = vpack.c.b16 %v490, %v489
      %v501 = vpack.c.b16 %v492, %v491
      %v502 = vpack.c.b16 %v494, %v493
      %511 = vmatprep.subr.bf16.mxu0 0
      %512 = vmatpush1.bf16.msra.mxu0 %v502
      %513 = vmatprep.subr.bf16.mxu0 0
      %514 = vmatpush1.bf16.msra.mxu0 %v501
      %515 = vmatprep.subr.bf16.mxu0 0
      %516 = vmatpush1.bf16.msra.mxu0 %v500
      %517 = vmatprep.subr.bf16.mxu0 0
      %518 = vmatpush1.bf16.msra.mxu0 %v499
      %519 = vmatprep.subr.bf16.mxu0 0
      %520 = vmatpush1.bf16.msra.mxu0 %v498
      %521 = vmatprep.subr.bf16.mxu0 0
      %522 = vmatpush1.bf16.msra.mxu0 %v497
      %523 = vmatprep.subr.bf16.mxu0 0
      %524 = vmatpush1.bf16.msra.mxu0 %v496
      %525 = vmatprep.subr.bf16.mxu0 0
      %526 = vmatpush1.bf16.msra.mxu0 %v495
      %527 = vmatprep.subr.bf16.mxu0 0
      %528 = vmatpush2.bf16.msra.mxu0 0
      %529 = vmatprep.subr.bf16.mxu0 0
      %530 = vmatpush2.bf16.msra.mxu0 0
      %531 = vmatprep.subr.bf16.mxu0 0
      %532 = vmatpush2.bf16.msra.mxu0 0
      %533 = vmatprep.subr.bf16.mxu0 0
      %534 = vmatpush2.bf16.msra.mxu0 0
      %535 = vmatprep.subr.bf16.mxu0 0
      %536 = vmatpush2.bf16.msra.mxu0 0
      %537 = vmatprep.subr.bf16.mxu0 0
      %538 = vmatpush2.bf16.msra.mxu0 0
      %539 = vmatprep.subr.bf16.mxu0 0
      %540 = vmatpush2.bf16.msra.mxu0 0
      %541 = vmatprep.subr.bf16.mxu0 0
      %542 = vmatpush2.bf16.msra.mxu0 0
      %543 = vmatprep.mubr.bf16.mxu0 0
      %544 = vmatmul.mubr.bf16.gmra.mxu0 %v438
      %v545 = vpop.f32.mrf.mxu0
      %v546 = vadd.f32 %v461, %v545
      %v547 = vpop.f32.mrf.mxu0
      %v548 = vpop.f32.mrf.mxu0
      %v549 = vadd.f32 %v461, %v548
      %v550 = vpop.f32.mrf.mxu0
      %551 = vmatprep.mubr.bf16.mxu0 0
      %552 = vmatmul.mubr.bf16.gmra.mxu0 %v439
      %v553 = vpop.f32.mrf.mxu0
      %v554 = vadd.f32 %v461, %v553
      %v555 = vpop.f32.mrf.mxu0
      %v556 = vpop.f32.mrf.mxu0
      %v557 = vadd.f32 %v461, %v556
      %v558 = vpop.f32.mrf.mxu0
      %559 = vdwg.mxu0
      %s560 = scalar_lea.vmem [#allocation9], %s63
      %561 = vst [vmem:[%s560] sm:$0xff] %v546
      %562 = vst [vmem:[%s560 + $0x8] sm:$0xff] %v549
      %563 = vst [vmem:[%s560 + $0x10] sm:$0xff] %v554
      %564 = vst [vmem:[%s560 + $0x18] sm:$0xff] %v557
    $region41: #{tpu_custom_call.1} parent=1 // pred_fallthru
      _
    // Predicated region
    $region42: #{tpu_custom_call.1} parent=1 // pred_check
      _
    $region43: #{tpu_custom_call.1} parent=1 // pred_check_branch
      %566 = sbr.rel (0) target = $region45
    $region44: #{tpu_custom_call.1} parent=1 // pred_region
      %s568 = ssub.s32 512, 512
      %569 = vsyncadd [#allocation5], %s568
      %s570 = sshll.u32 [#allocation9], 4
      %s571 = int_to_ptr.vmem [resolvable:$true] %s570
      %576 = dma.vmem_to_hbm [thread:$0]  %s571, 512, %s5, [#allocation5], 128, 128, 8
    $region45: #{tpu_custom_call.1} parent=1 // pred_fallthru
      _
    // Predicated region
    $region46: #{tpu_custom_call.1} parent=1 // pred_check
      _
    $region47: #{tpu_custom_call.1} parent=1 // pred_check_branch
      %578 = sbr.rel (0) target = $region49
    $region48: #{tpu_custom_call.1} parent=1 // pred_region
      %579 = dma.done [#allocation5], 512
    $region49: #{tpu_custom_call.1} parent=1 // pred_fallthru
      _
    %580 = vsyncpa [#allocation4], 1
    %581 = vsyncpa [#allocation7], 1
    %582 = vsyncpa [#allocation5], 1

</llo_original>
